<compile_context>
chip_gen: v5e
topology: v5e:2x2
jax: 0.10.0
libtpu: 0.0.40
codegen_flags: <defaults>
</compile_context>

<pallas_src>
from functools import partial

import jax
import jax.numpy as jnp
from jax.experimental import pallas as pl
from jax.experimental.pallas import tpu as pltpu


# ---------------------------------------------------------------------------
# Portable in-kernel RNG: murmur3-style 32-bit mixing + Box-Muller.
# ---------------------------------------------------------------------------
def _rotl(x, r: int):
    return (x << jnp.uint32(r)) | (x >> jnp.uint32(32 - r))


def _mix(h, k):
    """murmur3 combine step (uint32)."""
    k = k * jnp.uint32(0xCC9E2D51)
    k = _rotl(k, 15)
    k = k * jnp.uint32(0x1B873593)
    h = h ^ k
    h = _rotl(h, 13)
    h = h * jnp.uint32(5) + jnp.uint32(0xE6546B64)
    return h


def _fmix(h):
    """murmur3 finalizer (uint32)."""
    h = h ^ (h >> jnp.uint32(16))
    h = h * jnp.uint32(0x85EBCA6B)
    h = h ^ (h >> jnp.uint32(13))
    h = h * jnp.uint32(0xC2B2AE35)
    h = h ^ (h >> jnp.uint32(16))
    return h


def _bits_to_unit_open(bits):
    """uint32 bits -> float32 uniform in the open interval (0, 1)."""
    mant = (bits >> jnp.uint32(9)).astype(jnp.int32)          # top 23 bits
    return (mant.astype(jnp.float32) + 0.5) * jnp.float32(1.0 / (1 << 23))


# ---------------------------------------------------------------------------
# Kernel
# ---------------------------------------------------------------------------
def _adain_kernel(seed_ref, x_ref, w_ref, o_ref, *, slope: float, tile_t: int):
    b = pl.program_id(0)           # batch index
    tt = pl.program_id(1)          # time-tile index

    _, C, Tt = x_ref.shape         # block is (1, C, TILE_T)

    # Global (channel, time) coordinates of every element in this block.
    c_idx = jax.lax.broadcasted_iota(jnp.int32, (C, Tt), 0).astype(jnp.uint32)
    t_loc = jax.lax.broadcasted_iota(jnp.int32, (C, Tt), 1).astype(jnp.uint32)
    t_idx = t_loc + jnp.uint32(tile_t) * tt.astype(jnp.uint32)

    # Unique, order-independent stream per element: hash(seed, b, c, t).
    h = _mix(seed_ref[0].astype(jnp.uint32), b.astype(jnp.uint32))
    h = _mix(h, c_idx)
    h = _mix(h, t_idx)
    bits1 = _fmix(h)
    bits2 = _fmix(h ^ jnp.uint32(0x9E3779B9))     # decorrelated second stream

    # Box-Muller: two uniforms -> one standard normal per element.
    u1 = _bits_to_unit_open(bits1)
    u2 = _bits_to_unit_open(bits2)
    r = jnp.sqrt(-2.0 * jnp.log(u1))
    noise = r * jnp.cos((2.0 * jnp.pi) * u2)      # (C, Tt) f32, N(0, 1)

    # gaussian = noise * weight[None, :, None]
    w = w_ref[...]                                # (C, 1) f32, broadcasts over T
    y = x_ref[0].astype(jnp.float32) + noise * w  # (C, Tt)

    # LeakyReLU(negative_slope=slope)
    o_ref[0] = jnp.where(y >= 0.0, y, slope * y).astype(o_ref.dtype)


# ---------------------------------------------------------------------------
# Wrapper
# ---------------------------------------------------------------------------
def _choose_tile_t(T: int, max_tile: int = 2048) -> int:
    """Largest multiple-of-128 divisor of T that is <= max_tile (else full T)."""
    if T % 128 != 0:
        return T                     # full-extent block (no lane padding possible)
    tile = min(T, max_tile)
    tile -= tile % 128
    while T % tile != 0:
        tile -= 128
    return tile


def adain_forward(x: jax.Array, weight: jax.Array, seed: int, *,
                  leaky_relu_slope: float = 0.2,
                  tile_t: int | None = None) -> jax.Array:
    """AdaIN forward. x: (B, C, T), weight: (C,)."""
    B, C, T = x.shape
    if tile_t is None:
        tile_t = _choose_tile_t(T)
    elif not ((tile_t == T) or (tile_t % 128 == 0 and T % tile_t == 0)):
        raise ValueError("tile_t must divide T and be a multiple of 128 (or == T)")
    n_t = T // tile_t

    w = weight.reshape(C, 1).astype(jnp.float32)
    seed_arr = jnp.asarray([seed], dtype=jnp.int32)

    # VMEM budget: double-buffered in+out tiles + f32 temporaries, clamped so it
    # is safe on v5e/v6e (128 MiB) and v7x (64 MiB physical).
    io_bytes = C * tile_t * x.dtype.itemsize
    f32_bytes = C * tile_t * 4
    vmem_limit = int(min(max(4 * io_bytes + 8 * f32_bytes + (2 << 20), 16 << 20),
                         48 << 20))

    nelem = B * C * T
    cost = pl.CostEstimate(
        flops=25 * nelem,               # hash + Box-Muller + axpy + leaky-relu
        transcendentals=3 * nelem,      # log, cos, sqrt per element
        bytes_accessed=2 * nelem * x.dtype.itemsize + C * 4,
    )

    return pl.pallas_call(
        partial(_adain_kernel, slope=leaky_relu_slope, tile_t=tile_t),
        out_shape=jax.ShapeDtypeStruct((B, C, T), x.dtype),
        grid=(B, n_t),
        in_specs=[
            pl.BlockSpec(memory_space=pltpu.SMEM),               # seed scalar
            pl.BlockSpec((1, C, tile_t), lambda b, t: (b, 0, t)),  # x tile
            pl.BlockSpec((C, 1), lambda b, t: (0, 0)),             # weight (resident)
        ],
        out_specs=pl.BlockSpec((1, C, tile_t), lambda b, t: (b, 0, t)),
        compiler_params=pltpu.CompilerParams(
            dimension_semantics=("parallel", "arbitrary"),  # batch across cores (v7x)
            vmem_limit_bytes=vmem_limit,
        ),
        cost_estimate=cost,
    )(seed_arr, x, w)


# ---------------------------------------------------------------------------
# Smoke test
# ---------------------------------------------------------------------------
if __name__ == "__main__":
    key = jax.random.PRNGKey(0)

    # Small shapes consistent with the module: x is (batch, channels, time).
    B, C, T = 2, 8, 512
    x = jax.random.normal(key, (B, C, T), dtype=jnp.float32)

    # nn.Parameter(torch.ones(channels))
    weight = jnp.ones((C,), dtype=jnp.float32)

    # Tiled path (grid = (B, T // 128)).
    out = adain_forward(x, weight, seed=0, leaky_relu_slope=0.2, tile_t=128)
    out = jax.block_until_ready(out)
    assert out.shape == (B, C, T)
    assert out.dtype == x.dtype
    assert bool(jnp.all(jnp.isfinite(out)))

    # Deterministic correctness check: with weight == 0 the noise vanishes and
    # the kernel must reduce exactly to LeakyReLU(x).
    out0 = adain_forward(x, jnp.zeros((C,), jnp.float32), seed=0)
    out0 = jax.block_until_ready(out0)
    ref0 = jnp.where(x >= 0.0, x, 0.2 * x)
    assert bool(jnp.allclose(out0, ref0, atol=1e-6, rtol=1e-6))

    print("KERNEL_OK")
</pallas_src>

<mosaic_0001>
module attributes {stable_mosaic.version = 11 : i64} {
  func.func @_adain_kernel(%arg0: i32, %arg1: i32, %arg2: memref<1xi32, #tpu.memory_space<smem>>, %arg3: memref<1x8x128xf32, #tpu.memory_space<vmem>>, %arg4: memref<8x1xf32, #tpu.memory_space<vmem>>, %arg5: memref<1x8x128xf32, #tpu.memory_space<vmem>>) attributes {dimension_semantics = [#tpu.dimension_semantics<parallel>, #tpu.dimension_semantics<arbitrary>], iteration_bounds = array<i64: 2, 4>, scalar_prefetch = 0 : i64, scratch_operands = 0 : i64, tpu.core_type = #tpu.core_type<tc>, window_params = [{transform_indices = @transform_0, window_bounds = array<i64: 1>}, {transform_indices = @transform_1, window_bounds = array<i64: 1, 8, 128>}, {pipeline_mode = #tpu.pipeline_mode<synchronous>, transform_indices = @transform_2, window_bounds = array<i64: 8, 1>}, {transform_indices = @transform_3, window_bounds = array<i64: 1, 8, 128>}]} {
    %0 = tpu.iota {dimensions = array<i32: 0>} : vector<8x128xi32>
    %1 = tpu.iota {dimensions = array<i32: 1>} : vector<8x128xi32>
    %c128_i32 = arith.constant 128 : i32
    %2 = arith.muli %c128_i32, %arg1 : i32
    %3 = vector.broadcast %2 : i32 to vector<8x128xi32>
    %4 = arith.addi %1, %3 : vector<8x128xi32>
    %c0 = arith.constant 0 : index
    %5 = memref.load %arg2[%c0] : memref<1xi32, #tpu.memory_space<smem>>
    %c-862048943_i32 = arith.constant -862048943 : i32
    %6 = arith.muli %arg0, %c-862048943_i32 : i32
    %c15_i32 = arith.constant 15 : i32
    %7 = arith.shli %6, %c15_i32 : i32
    %c17_i32 = arith.constant 17 : i32
    %8 = arith.shrui %6, %c17_i32 : i32
    %9 = arith.ori %7, %8 : i32
    %c461845907_i32 = arith.constant 461845907 : i32
    %10 = arith.muli %9, %c461845907_i32 : i32
    %11 = arith.xori %5, %10 : i32
    %c13_i32 = arith.constant 13 : i32
    %12 = arith.shli %11, %c13_i32 : i32
    %c19_i32 = arith.constant 19 : i32
    %13 = arith.shrui %11, %c19_i32 : i32
    %14 = arith.ori %12, %13 : i32
    %c5_i32 = arith.constant 5 : i32
    %15 = arith.muli %14, %c5_i32 : i32
    %c-430675100_i32 = arith.constant -430675100 : i32
    %16 = arith.addi %15, %c-430675100_i32 : i32
    %c-862048943_i32_0 = arith.constant -862048943 : i32
    %17 = vector.broadcast %c-862048943_i32_0 : i32 to vector<8x128xi32>
    %18 = arith.muli %0, %17 : vector<8x128xi32>
    %c15_i32_1 = arith.constant 15 : i32
    %19 = vector.broadcast %c15_i32_1 : i32 to vector<8x128xi32>
    %20 = arith.shli %18, %19 : vector<8x128xi32>
    %c17_i32_2 = arith.constant 17 : i32
    %21 = vector.broadcast %c17_i32_2 : i32 to vector<8x128xi32>
    %22 = arith.shrui %18, %21 : vector<8x128xi32>
    %23 = arith.ori %20, %22 : vector<8x128xi32>
    %c461845907_i32_3 = arith.constant 461845907 : i32
    %24 = vector.broadcast %c461845907_i32_3 : i32 to vector<8x128xi32>
    %25 = arith.muli %23, %24 : vector<8x128xi32>
    %26 = vector.broadcast %16 : i32 to vector<8x128xi32>
    %27 = arith.xori %26, %25 : vector<8x128xi32>
    %c13_i32_4 = arith.constant 13 : i32
    %28 = vector.broadcast %c13_i32_4 : i32 to vector<8x128xi32>
    %29 = arith.shli %27, %28 : vector<8x128xi32>
    %c19_i32_5 = arith.constant 19 : i32
    %30 = vector.broadcast %c19_i32_5 : i32 to vector<8x128xi32>
    %31 = arith.shrui %27, %30 : vector<8x128xi32>
    %32 = arith.ori %29, %31 : vector<8x128xi32>
    %c5_i32_6 = arith.constant 5 : i32
    %33 = vector.broadcast %c5_i32_6 : i32 to vector<8x128xi32>
    %34 = arith.muli %32, %33 : vector<8x128xi32>
    %c-430675100_i32_7 = arith.constant -430675100 : i32
    %35 = vector.broadcast %c-430675100_i32_7 : i32 to vector<8x128xi32>
    %36 = arith.addi %34, %35 : vector<8x128xi32>
    %c-862048943_i32_8 = arith.constant -862048943 : i32
    %37 = vector.broadcast %c-862048943_i32_8 : i32 to vector<8x128xi32>
    %38 = arith.muli %4, %37 : vector<8x128xi32>
    %c15_i32_9 = arith.constant 15 : i32
    %39 = vector.broadcast %c15_i32_9 : i32 to vector<8x128xi32>
    %40 = arith.shli %38, %39 : vector<8x128xi32>
    %c17_i32_10 = arith.constant 17 : i32
    %41 = vector.broadcast %c17_i32_10 : i32 to vector<8x128xi32>
    %42 = arith.shrui %38, %41 : vector<8x128xi32>
    %43 = arith.ori %40, %42 : vector<8x128xi32>
    %c461845907_i32_11 = arith.constant 461845907 : i32
    %44 = vector.broadcast %c461845907_i32_11 : i32 to vector<8x128xi32>
    %45 = arith.muli %43, %44 : vector<8x128xi32>
    %46 = arith.xori %36, %45 : vector<8x128xi32>
    %c13_i32_12 = arith.constant 13 : i32
    %47 = vector.broadcast %c13_i32_12 : i32 to vector<8x128xi32>
    %48 = arith.shli %46, %47 : vector<8x128xi32>
    %c19_i32_13 = arith.constant 19 : i32
    %49 = vector.broadcast %c19_i32_13 : i32 to vector<8x128xi32>
    %50 = arith.shrui %46, %49 : vector<8x128xi32>
    %51 = arith.ori %48, %50 : vector<8x128xi32>
    %c5_i32_14 = arith.constant 5 : i32
    %52 = vector.broadcast %c5_i32_14 : i32 to vector<8x128xi32>
    %53 = arith.muli %51, %52 : vector<8x128xi32>
    %c-430675100_i32_15 = arith.constant -430675100 : i32
    %54 = vector.broadcast %c-430675100_i32_15 : i32 to vector<8x128xi32>
    %55 = arith.addi %53, %54 : vector<8x128xi32>
    %c16_i32 = arith.constant 16 : i32
    %56 = vector.broadcast %c16_i32 : i32 to vector<8x128xi32>
    %57 = arith.shrui %55, %56 : vector<8x128xi32>
    %58 = arith.xori %55, %57 : vector<8x128xi32>
    %c-2048144789_i32 = arith.constant -2048144789 : i32
    %59 = vector.broadcast %c-2048144789_i32 : i32 to vector<8x128xi32>
    %60 = arith.muli %58, %59 : vector<8x128xi32>
    %c13_i32_16 = arith.constant 13 : i32
    %61 = vector.broadcast %c13_i32_16 : i32 to vector<8x128xi32>
    %62 = arith.shrui %60, %61 : vector<8x128xi32>
    %63 = arith.xori %60, %62 : vector<8x128xi32>
    %c-1028477387_i32 = arith.constant -1028477387 : i32
    %64 = vector.broadcast %c-1028477387_i32 : i32 to vector<8x128xi32>
    %65 = arith.muli %63, %64 : vector<8x128xi32>
    %c16_i32_17 = arith.constant 16 : i32
    %66 = vector.broadcast %c16_i32_17 : i32 to vector<8x128xi32>
    %67 = arith.shrui %65, %66 : vector<8x128xi32>
    %68 = arith.xori %65, %67 : vector<8x128xi32>
    %c-1640531527_i32 = arith.constant -1640531527 : i32
    %69 = vector.broadcast %c-1640531527_i32 : i32 to vector<8x128xi32>
    %70 = arith.xori %55, %69 : vector<8x128xi32>
    %c16_i32_18 = arith.constant 16 : i32
    %71 = vector.broadcast %c16_i32_18 : i32 to vector<8x128xi32>
    %72 = arith.shrui %70, %71 : vector<8x128xi32>
    %73 = arith.xori %70, %72 : vector<8x128xi32>
    %c-2048144789_i32_19 = arith.constant -2048144789 : i32
    %74 = vector.broadcast %c-2048144789_i32_19 : i32 to vector<8x128xi32>
    %75 = arith.muli %73, %74 : vector<8x128xi32>
    %c13_i32_20 = arith.constant 13 : i32
    %76 = vector.broadcast %c13_i32_20 : i32 to vector<8x128xi32>
    %77 = arith.shrui %75, %76 : vector<8x128xi32>
    %78 = arith.xori %75, %77 : vector<8x128xi32>
    %c-1028477387_i32_21 = arith.constant -1028477387 : i32
    %79 = vector.broadcast %c-1028477387_i32_21 : i32 to vector<8x128xi32>
    %80 = arith.muli %78, %79 : vector<8x128xi32>
    %c16_i32_22 = arith.constant 16 : i32
    %81 = vector.broadcast %c16_i32_22 : i32 to vector<8x128xi32>
    %82 = arith.shrui %80, %81 : vector<8x128xi32>
    %83 = arith.xori %80, %82 : vector<8x128xi32>
    %c9_i32 = arith.constant 9 : i32
    %84 = vector.broadcast %c9_i32 : i32 to vector<8x128xi32>
    %85 = arith.shrui %68, %84 : vector<8x128xi32>
    %86 = arith.sitofp %85 : vector<8x128xi32> to vector<8x128xf32>
    %cst = arith.constant 5.000000e-01 : f32
    %87 = vector.broadcast %cst : f32 to vector<8x128xf32>
    %88 = arith.addf %86, %87 : vector<8x128xf32>
    %cst_23 = arith.constant 1.1920929E-7 : f32
    %89 = vector.broadcast %cst_23 : f32 to vector<8x128xf32>
    %90 = arith.mulf %88, %89 : vector<8x128xf32>
    %c9_i32_24 = arith.constant 9 : i32
    %91 = vector.broadcast %c9_i32_24 : i32 to vector<8x128xi32>
    %92 = arith.shrui %83, %91 : vector<8x128xi32>
    %93 = arith.sitofp %92 : vector<8x128xi32> to vector<8x128xf32>
    %cst_25 = arith.constant 5.000000e-01 : f32
    %94 = vector.broadcast %cst_25 : f32 to vector<8x128xf32>
    %95 = arith.addf %93, %94 : vector<8x128xf32>
    %cst_26 = arith.constant 1.1920929E-7 : f32
    %96 = vector.broadcast %cst_26 : f32 to vector<8x128xf32>
    %97 = arith.mulf %95, %96 : vector<8x128xf32>
    %98 = math.log %90 : vector<8x128xf32>
    %cst_27 = arith.constant -2.000000e+00 : f32
    %99 = vector.broadcast %cst_27 : f32 to vector<8x128xf32>
    %100 = arith.mulf %99, %98 : vector<8x128xf32>
    %101 = math.sqrt %100 : vector<8x128xf32>
    %cst_28 = arith.constant 6.28318548 : f32
    %102 = vector.broadcast %cst_28 : f32 to vector<8x128xf32>
    %103 = arith.mulf %102, %97 : vector<8x128xf32>
    %104 = math.cos %103 : vector<8x128xf32>
    %105 = arith.mulf %101, %104 : vector<8x128xf32>
    %c0_29 = arith.constant 0 : index
    %c0_30 = arith.constant 0 : index
    %106 = vector.load %arg4[%c0_29, %c0_30] : memref<8x1xf32, #tpu.memory_space<vmem>>, vector<8x1xf32>
    %c0_31 = arith.constant 0 : index
    %c0_32 = arith.constant 0 : index
    %c0_33 = arith.constant 0 : index
    %107 = vector.load %arg3[%c0_31, %c0_32, %c0_33] : memref<1x8x128xf32, #tpu.memory_space<vmem>>, vector<1x8x128xf32>
    %108 = vector.shape_cast %107 : vector<1x8x128xf32> to vector<8x128xf32>
    %109 = vector.broadcast %106 : vector<8x1xf32> to vector<8x128xf32>
    %110 = arith.mulf %105, %109 : vector<8x128xf32>
    %111 = arith.addf %108, %110 : vector<8x128xf32>
    %cst_34 = arith.constant 0.000000e+00 : f32
    %112 = vector.broadcast %cst_34 : f32 to vector<8x128xf32>
    %113 = arith.cmpf oge, %111, %112 : vector<8x128xf32>
    %cst_35 = arith.constant 2.000000e-01 : f32
    %114 = vector.broadcast %cst_35 : f32 to vector<8x128xf32>
    %115 = arith.mulf %114, %111 : vector<8x128xf32>
    %116 = arith.select %113, %111, %115 : vector<8x128xi1>, vector<8x128xf32>
    %c0_36 = arith.constant 0 : index
    %c0_37 = arith.constant 0 : index
    %c0_38 = arith.constant 0 : index
    %117 = vector.load %arg5[%c0_36, %c0_37, %c0_38] : memref<1x8x128xf32, #tpu.memory_space<vmem>>, vector<1x8x128xf32>
    %118 = vector.shape_cast %117 : vector<1x8x128xf32> to vector<8x128xf32>
    %119 = vector.shape_cast %116 : vector<8x128xf32> to vector<1x8x128xf32>
    tpu.vector_store %arg5[%c0_36, %c0_37, %c0_38], %119 {strides = array<i32>} : memref<1x8x128xf32, #tpu.memory_space<vmem>>, vector<1x8x128xf32>,
    return
  }
  func.func @transform_0(%arg0: i32, %arg1: i32) -> i32 {
    %c0_i32 = arith.constant 0 : i32
    %c0_i32_0 = arith.constant 0 : i32
    return %c0_i32 : i32
  }
  func.func @transform_1(%arg0: i32, %arg1: i32) -> (i32, i32, i32) {
    %c0_i32 = arith.constant 0 : i32
    %c0_i32_0 = arith.constant 0 : i32
    return %arg0, %c0_i32, %arg1 : i32, i32, i32
  }
  func.func @transform_2(%arg0: i32, %arg1: i32) -> (i32, i32) {
    %c0_i32 = arith.constant 0 : i32
    %c0_i32_0 = arith.constant 0 : i32
    %c0_i32_1 = arith.constant 0 : i32
    return %c0_i32, %c0_i32_0 : i32, i32
  }
  func.func @transform_3(%arg0: i32, %arg1: i32) -> (i32, i32, i32) {
    %c0_i32 = arith.constant 0 : i32
    %c0_i32_0 = arith.constant 0 : i32
    return %arg0, %c0_i32, %arg1 : i32, i32, i32
  }
}

</mosaic_0001>

<llo_original>
// kernel: tpu_custom_call.1
$region0: #{tpu_custom_call.1}
  #allocation0 [shape = 'u32[]', space=smem, size = 0x4, offset = 0x4, fixed_abs, tag = 'smem constant byte address 0x4 - core index']
  #allocation1 [shape = 'u32[72,128]{1,0:T(1,128)}', space=vmem, size = 0x9000, scoped, tag = 'internal scratch']
  #allocation2 [shape = 's32[1]{0:T(128)S(6)}', space=smem, size = 0x200, scoped, tag = 'scoped memory for tpu_custom_call.1']
  %s0 = inlined_call_operand.<no memory space> [shape: s32[1], index: 0, kind: input, shape index: {}]
  %s1 = inlined_call_operand.hbm [shape: f32[2,8,512], index: 1, kind: input, shape index: {}]
  %s2 = inlined_call_operand.vmem [shape: f32[8,1], index: 2, kind: input, shape index: {}]
  %s3 = inlined_call_operand.hbm [shape: f32[2,8,512], index: 3, kind: output, shape index: {}]
  %s4 = sld [smem:[#allocation0]]
  $region49: #{tpu_custom_call.1} parent=0
    _
  %s6 = ssub.s32 1, %s4
  %s7 = scalar_select 0, %s6, %s4
  %8 = sst [smem:[#allocation2]] %s0
  $region1: #{tpu_custom_call.1} parent=0
    #allocation3 [shape = 'u8[8192]{0}', space=vmem, size = 0x2000, scoped, tag = 'input window, operand 1']
    #allocation4 [shape = 's32[2]{0}', space=sflag, size = 0x8, scoped, tag = 'scoped memory for tpu_custom_call.1']
    #allocation5 [shape = 's32[2]{0}', space=sflag, size = 0x8, scoped, tag = 'scoped memory for tpu_custom_call.1']
    #allocation6 [shape = 'u8[8192]{0}', space=vmem, size = 0x2000, scoped, tag = 'output window, operand 0']
    %9 = vsyncpa [#allocation4], 0
    %s10 = scalar_lea.sflag [#allocation4], 1
    %11 = vsyncpa %s10, 0
    %12 = vsyncpa [#allocation5], 0
    %s13 = scalar_lea.sflag [#allocation5], 1
    %14 = vsyncpa %s13, 0
    loop: start=0, step=1, limit=10
    $region2: #{tpu_custom_call.1} parent=1 // loop_pre_header
      _
    $region3: #{tpu_custom_call.1} parent=1 // loop_header
      %s16 = sphi 0, %s20
      %p17 = scmp.ge.s32.totalorder %s16, 10
      %s23 = sphi 0, %s35
      %s24 = sphi 0, %s31
      %s25 = sphi 0, %s23
      %s26 = sphi 0, %s24
      %s27 = sphi 0, %s25
      %s28 = sphi 0, %s26
      %s36 = sphi 0, %s36
      %s38 = sphi 0, %s36
      %s39 = sphi 0, %s38
      %s53 = sphi 0, %s39
      %s61 = sphi 0, %s63
      %s64 = sphi 0, %s61
      %s65 = sphi 0, %s64
      %s81 = sphi 0, %s65
      %s85 = sphi 0, %s85
      %s87 = sphi 0, %s85
      %s88 = sphi 0, %s87
      %s102 = sphi 0, %s88
      %s110 = sphi 0, %s112
      %s113 = sphi 0, %s110
      %s114 = sphi 0, %s113
      %s130 = sphi 0, %s114
    $region4: #{tpu_custom_call.1} parent=1 // loop_header_branch
      %19 = sbr.rel (%p17) target = $region8
    $region5: #{tpu_custom_call.1} parent=1 // loop_body
      %s21 = ssub.s32 %s16, 1
      %s22 = ssub.s32 %s16, 2
      %s29 = sadd.s32 1, %s24
      %p30 = scmp.ge.s32.totalorder %s29, 4
      %s31 = scalar_select %p30, 0, %s29
      %s32 = sadd.s32 1, %s23
      %s33 = scalar_select %p30, %s32, %s23
      %p34 = scmp.ge.s32.totalorder %s33, 2
      %s35 = scalar_select %p34, 0, %s33
      %s37 = sadd.s32 %s36, 1
      %p40 = scmp.eq.s32.totalorder %s16, 7
      %p41 = scmp.ne.s32.totalorder %s36, %s38
      %p42 = scmp.eq.s32.totalorder %s16, 0
      %p43 = por %p41, %p42
      %p44 = scmp.ne.s32.totalorder %s36, %s38
      %p45 = scmp.eq.s32.totalorder %s21, 7
      %p46 = por %p44, %p45
      %p47 = scmp.ne.s32.totalorder %s38, %s39
      %p48 = scmp.eq.s32.totalorder %s21, 0
      %p49 = por %p47, %p48
      %p50 = scmp.ne.s32.totalorder %s38, %s39
      %p51 = scmp.eq.s32.totalorder %s22, 7
      %p52 = por %p50, %p51
      %p54 = scmp.ne.s32.totalorder %s39, %s53
      %p55 = scmp.eq.s32.totalorder %s22, 0
      %p56 = por %p54, %p55
      %s57 = ssub.s32 %s23, %s35
      %s58 = ssub.s32 %s24, %s31
      %s59 = sor.u32 %s57, %s58
      %p60 = scmp.eq.s32.totalorder %s59, 0
      %s62 = sadd.s32 %s61, 1
      %s63 = scalar_select %p60, %s61, %s62
      %p66 = pneg %p60
      %p67 = scmp.eq.s32.totalorder %s16, 7
      %p68 = por %p66, %p67
      %p69 = scmp.ne.s32.totalorder %s61, %s64
      %p70 = scmp.eq.s32.totalorder %s16, 0
      %p71 = por %p69, %p70
      %p72 = scmp.ne.s32.totalorder %s61, %s64
      %p73 = scmp.eq.s32.totalorder %s21, 7
      %p74 = por %p72, %p73
      %p75 = scmp.ne.s32.totalorder %s64, %s65
      %p76 = scmp.eq.s32.totalorder %s21, 0
      %p77 = por %p75, %p76
      %p78 = scmp.ne.s32.totalorder %s64, %s65
      %p79 = scmp.eq.s32.totalorder %s22, 7
      %p80 = por %p78, %p79
      %p82 = scmp.ne.s32.totalorder %s65, %s81
      %p83 = scmp.eq.s32.totalorder %s22, 0
      %p84 = por %p82, %p83
      %s86 = sadd.s32 %s85, 1
      %p89 = scmp.eq.s32.totalorder %s16, 7
      %p90 = scmp.ne.s32.totalorder %s85, %s87
      %p91 = scmp.eq.s32.totalorder %s16, 0
      %p92 = por %p90, %p91
      %p93 = scmp.ne.s32.totalorder %s85, %s87
      %p94 = scmp.eq.s32.totalorder %s21, 7
      %p95 = por %p93, %p94
      %p96 = scmp.ne.s32.totalorder %s87, %s88
      %p97 = scmp.eq.s32.totalorder %s21, 0
      %p98 = por %p96, %p97
      %p99 = scmp.ne.s32.totalorder %s87, %s88
      %p100 = scmp.eq.s32.totalorder %s22, 7
      %p101 = por %p99, %p100
      %p103 = scmp.ne.s32.totalorder %s88, %s102
      %p104 = scmp.eq.s32.totalorder %s22, 0
      %p105 = por %p103, %p104
      %s106 = ssub.s32 %s23, %s35
      %s107 = ssub.s32 %s24, %s31
      %s108 = sor.u32 %s106, %s107
      %p109 = scmp.eq.s32.totalorder %s108, 0
      %s111 = sadd.s32 %s110, 1
      %s112 = scalar_select %p109, %s110, %s111
      %p115 = pneg %p109
      %p116 = scmp.eq.s32.totalorder %s16, 7
      %p117 = por %p115, %p116
      %p118 = scmp.ne.s32.totalorder %s110, %s113
      %p119 = scmp.eq.s32.totalorder %s16, 0
      %p120 = por %p118, %p119
      %p121 = scmp.ne.s32.totalorder %s110, %s113
      %p122 = scmp.eq.s32.totalorder %s21, 7
      %p123 = por %p121, %p122
      %p124 = scmp.ne.s32.totalorder %s113, %s114
      %p125 = scmp.eq.s32.totalorder %s21, 0
      %p126 = por %p124, %p125
      %p127 = scmp.ne.s32.totalorder %s113, %s114
      %p128 = scmp.eq.s32.totalorder %s22, 7
      %p129 = por %p127, %p128
      %p131 = scmp.ne.s32.totalorder %s114, %s130
      %p132 = scmp.eq.s32.totalorder %s22, 0
      %p133 = por %p131, %p132
      %p134 = scmp.le.s32.totalorder 1, %s16
      %p135 = scmp.lt.s32.totalorder %s16, 9
      %p136 = pnand %p134, %p135
      %p137 = pneg %p136
      // Predicated region
      $region9: #{tpu_custom_call.1} parent=5 // pred_check
        _
      $region10: #{tpu_custom_call.1} parent=5 // pred_check_branch
        %139 = sbr.rel (%p136) target = $region12
      $region11: #{tpu_custom_call.1} parent=5 // pred_region
        %s140 = ssub.s32 %s16, 1
        // Predicated region
        $region13: #{tpu_custom_call.1} parent=11 // pred_check
          %p141 = pneg %p49
        $region14: #{tpu_custom_call.1} parent=11 // pred_check_branch
          %143 = sbr.rel (%p141) target = $region16
        $region15: #{tpu_custom_call.1} parent=11 // pred_region
          _
        $region16: #{tpu_custom_call.1} parent=11 // pred_fallthru
          _
        // Predicated region
        $region17: #{tpu_custom_call.1} parent=11 // pred_check
          %p144 = pneg %p98
        $region18: #{tpu_custom_call.1} parent=11 // pred_check_branch
          %146 = sbr.rel (%p144) target = $region20
        $region19: #{tpu_custom_call.1} parent=11 // pred_region
          _
        $region20: #{tpu_custom_call.1} parent=11 // pred_fallthru
          _
      $region12: #{tpu_custom_call.1} parent=5 // pred_fallthru
        _
      %p147 = scmp.lt.s32.totalorder %s16, 8
      // Predicated region
      $region21: #{tpu_custom_call.1} parent=5 // pred_check
        %p148 = pneg %p147
      $region22: #{tpu_custom_call.1} parent=5 // pred_check_branch
        %150 = sbr.rel (%p148) target = $region24
      $region23: #{tpu_custom_call.1} parent=5 // pred_region
        // Predicated region
        $region25: #{tpu_custom_call.1} parent=23 // pred_check
          %p151 = pneg %p71
        $region26: #{tpu_custom_call.1} parent=23 // pred_check_branch
          %153 = sbr.rel (%p151) target = $region28
        $region27: #{tpu_custom_call.1} parent=23 // pred_region
          %s154 = sand.u32 %s61, 1
          %s155 = scalar_lea.sflag [#allocation4], %s154
          %s156 = sand.u32 %s61, 1
          %s157 = smul.addr %s156, 8
          %s158 = scalar_lea.vmem [#allocation3], %s157
          %160 = vsyncadd %s155, 0
          %s161 = smul.addr %s23, 4
          %s162 = sadd.s32 %s24, %s161
          %s163 = smul.addr %s162, 8
          %s164 = scalar_lea.hbm %s1, %s163
          %s166 = sshll.u32 %s164, 4
          %s167 = int_to_ptr.hbm [resolvable:$true] %s166
          %s168 = sshll.u32 %s158, 4
          %s169 = int_to_ptr.vmem [resolvable:$true] %s168
          %171 = dma.hbm_to_vmem [thread:$0]  %s167, 128, %s169, %s155
        $region28: #{tpu_custom_call.1} parent=23 // pred_fallthru
          _
      $region24: #{tpu_custom_call.1} parent=5 // pred_fallthru
        _
      %p172 = scmp.le.s32.totalorder 1, %s16
      %p173 = scmp.lt.s32.totalorder %s16, 9
      %p174 = pnand %p172, %p173
      %p175 = pneg %p174
      // Predicated region
      $region29: #{tpu_custom_call.1} parent=5 // pred_check
        _
      $region30: #{tpu_custom_call.1} parent=5 // pred_check_branch
        %177 = sbr.rel (%p174) target = $region32
      $region31: #{tpu_custom_call.1} parent=5 // pred_region
        %s178 = ssub.s32 %s16, 1
        %s179 = sand.u32 %s64, 1
        %s180 = scalar_lea.sflag [#allocation4], %s179
        %s181 = sand.u32 %s64, 1
        %s182 = smul.addr %s181, 8
        %s183 = scalar_lea.vmem [#allocation3], %s182
        // Predicated region
        $region33: #{tpu_custom_call.1} parent=31 // pred_check
          %p184 = pneg %p77
        $region34: #{tpu_custom_call.1} parent=31 // pred_check_branch
          %186 = sbr.rel (%p184) target = $region36
        $region35: #{tpu_custom_call.1} parent=31 // pred_region
          %188 = dma.done %s180, 128
        $region36: #{tpu_custom_call.1} parent=31 // pred_fallthru
          _
        %p189 = pneg %p49
        %p190 = pneg %p46
        %s191 = sand.u32 %s64, 1
        %s192 = scalar_lea.sflag [#allocation4], %s191
        %s193 = sand.u32 %s64, 1
        %s194 = smul.addr %s193, 8
        %s195 = scalar_lea.vmem [#allocation3], %s194
        %p196 = pneg %p77
        %p197 = pneg %p74
        %p198 = pneg %p98
        %p199 = pneg %p95
        %p200 = pneg %p126
        %p201 = pneg %p123
        %s202 = sand.u32 %s113, 1
        %s203 = scalar_lea.sflag [#allocation5], %s202
        %s204 = sand.u32 %s113, 1
        %s205 = smul.addr %s204, 8
        %s206 = scalar_lea.vmem [#allocation6], %s205
        %v207 = vlaneseq
        %v208 = vshrl.u32 %v207, 7
        %v209 = vlaneseq
        %v210 = vand.u32 %v209, 127
        %s211 = smul.u32 %s26, 128
        %v212 = vstv %s211
        %v213 = vadd.s32 %v210, %v212
        %s214 = sld [smem:[#allocation2]]
        %s215 = smul.u32 %s25, 3432918353
        %s216 = sshll.u32 %s215, 15
        %s217 = sshrl.u32 %s215, 17
        %s218 = sor.u32 %s216, %s217
        %s219 = smul.u32 %s218, 461845907
        %s220 = sxor.u32 %s214, %s219
        %s221 = sshll.u32 %s220, 13
        %s222 = sshrl.u32 %s220, 19
        %s223 = sor.u32 %s221, %s222
        %s224 = smul.u32 %s223, 5
        %s225 = sadd.s32 %s224, 3864292196
        %v226 = vmul.u32 %v208, 3432918353
        %v227 = vshll.u32 %v226, 15
        %v228 = vshrl.u32 %v226, 17
        %v229 = vor.u32 %v227, %v228
        %v230 = vmul.u32 %v229, 461845907
        %v231 = vstv %s225
        %v232 = vxor.u32 %v231, %v230
        %v233 = vshll.u32 %v232, 13
        %v234 = vshrl.u32 %v232, 19
        %v235 = vor.u32 %v233, %v234
        %v236 = vmul.u32 %v235, 5
        %v237 = vadd.s32 %v236, 3864292196
        %v238 = vmul.u32 %v213, 3432918353
        %v239 = vshll.u32 %v238, 15
        %v240 = vshrl.u32 %v238, 17
        %v241 = vor.u32 %v239, %v240
        %v242 = vmul.u32 %v241, 461845907
        %v243 = vxor.u32 %v237, %v242
        %v244 = vshll.u32 %v243, 13
        %v245 = vshrl.u32 %v243, 19
        %v246 = vor.u32 %v244, %v245
        %v247 = vmul.u32 %v246, 5
        %v248 = vadd.s32 %v247, 3864292196
        %v249 = vshrl.u32 %v248, 16
        %v250 = vxor.u32 %v248, %v249
        %v251 = vmul.u32 %v250, 2246822507
        %v252 = vshrl.u32 %v251, 13
        %v253 = vxor.u32 %v251, %v252
        %v254 = vmul.u32 %v253, 3266489909
        %v255 = vshrl.u32 %v254, 16
        %v256 = vxor.u32 %v254, %v255
        %v257 = vxor.u32 %v248, 2654435769
        %v258 = vshrl.u32 %v257, 16
        %v259 = vxor.u32 %v257, %v258
        %v260 = vmul.u32 %v259, 2246822507
        %v261 = vshrl.u32 %v260, 13
        %v262 = vxor.u32 %v260, %v261
        %v263 = vmul.u32 %v262, 3266489909
        %v264 = vshrl.u32 %v263, 16
        %v265 = vxor.u32 %v263, %v264
        %v266 = vshrl.u32 %v256, 9
        %v267 = vcvt.s32.f32 %v266
        %v268 = vadd.f32 %v267, 0.5
        %v269 = vmul.f32 %v268, 1.1920929e-07
        %v270 = vshrl.u32 %v265, 9
        %v271 = vcvt.s32.f32 %v270
        %v272 = vadd.f32 %v271, 0.5
        %v273 = vmul.f32 %v272, 1.1920929e-07
        %v274 = vlog2.pop %v269
        %v275 = vmul.f32 %v274, 0.6931472
        %v276 = vmul.f32 %v275, -2.0
        %v277 = vrsqrt.pop %v276
        %v278 = vmul.f32 %v277, %v276
        %v279 = vmul.f32 %v278, %v277
        %v280 = vmul.f32 0.5, %v279
        %v281 = vsub.f32 1.5, %v280
        %v282 = vmul.f32 %v277, %v281
        %v283 = vmul.f32 %v276, %v282
        %vm284 = vcmp.eq.f32.partialorder %v276, inf
        %v285 = vsel %vm284, %v276, %v283
        %vm286 = vcmp.eq.f32.partialorder %v276, 0.0
        %v287 = vand.u32 %v276, 2147483648
        %v288 = vsel %vm286, %v287, %v285
        %v289 = vmul.f32 %v273, 6.2831855
        %v290 = vand.u32 2147483647, %v289
        %vm291 = vcmp.le.f32.partialorder %v290, 0.7853982
        %vm292 = vcmp.lt.s32.totalorder %v289, 0
        %v293 = vand.u32 %v289, 2139095040
        %v294 = vshrl.u32 %v293, 23
        %v295 = vsub.s32 %v294, 127
        %v296 = vand.u32 2147483647, %v289
        %v297 = vand.u32 %v296, 8388607
        %v298 = vor.u32 %v297, 8388608
        %v299 = vsub.s32 0, %v298
        %v300 = vadd.s32 %v295, 1
        %vm301 = vcmp.gt.s32.totalorder %v300, 0
        %v302 = vsel %vm301, %v300, 0
        %v303 = vshrl.u32 %v302, 5
        %v304 = vand.u32 %v302, 31
        %v305 = vsub.s32 32, %v304
        %v306 = vshrl.u32 683565275, %v305
        %v307 = vshll.u32 683565275, %v304
        %v308 = vshrl.u32 2475754826, %v305
        %v309 = vor.u32 %v307, %v308
        %v310 = vshll.u32 2475754826, %v304
        %v311 = vshrl.u32 2131351028, %v305
        %v312 = vor.u32 %v310, %v311
        %v313 = vshll.u32 2131351028, %v304
        %v314 = vshrl.u32 2102212464, %v305
        %v315 = vor.u32 %v313, %v314
        %v316 = vshll.u32 2102212464, %v304
        %v317 = vshrl.u32 920167782, %v305
        %v318 = vor.u32 %v316, %v317
        %v319 = vshll.u32 920167782, %v304
        %v320 = vshrl.u32 1326507024, %v305
        %v321 = vor.u32 %v319, %v320
        %vm322 = vcmp.lt.s32.totalorder %v303, 1
        %vm323 = vcmp.lt.s32.totalorder %v303, 2
        %vm324 = vcmp.lt.s32.totalorder %v303, 3
        %vm325 = vcmp.lt.s32.totalorder %v303, 4
        %v326 = vsel %vm322, %v306, %v309
        %v327 = vsel %vm325, %v315, 2102212464
        %v328 = vsel %vm324, %v312, %v327
        %v329 = vsel %vm323, %v326, %v328
        %v330 = vsel %vm322, %v309, %v312
        %v331 = vsel %vm325, %v318, 920167782
        %v332 = vsel %vm324, %v315, %v331
        %v333 = vsel %vm323, %v330, %v332
        %v334 = vsel %vm322, %v312, %v315
        %v335 = vsel %vm325, %v321, 1326507024
        %v336 = vsel %vm324, %v318, %v335
        %v337 = vsel %vm323, %v334, %v336
        %v338 = vshll.u32 %v298, 8
        %v339 = vand.u32 %v338, 65535
        %v340 = vshrl.u32 %v338, 16
        %v341 = vand.u32 %v337, 65535
        %v342 = vshrl.u32 %v337, 16
        %v343 = vmul.u32 %v339, %v341
        %v344 = vmul.u32 %v339, %v342
        %v345 = vmul.u32 %v340, %v341
        %v346 = vmul.u32 %v340, %v342
        %v347 = vshll.u32 %v344, 16
        %v348 = vshrl.u32 %v344, 16
        %v349 = vshll.u32 %v345, 16
        %v350 = vshrl.u32 %v345, 16
        %vm351 = vc.u32 %v343, %v347
        %v352 = vsel %vm351, 1, 0
        %v353 = vadd.s32 %v343, %v347
        %v354 = vadd.s32 %v346, %v352
        %vm355 = vc.u32 %v353, %v349
        %v356 = vsel %vm355, 1, 0
        %v357 = vadd.s32 %v353, %v349
        %v358 = vadd.s32 %v354, %v356
        %v359 = vadd.s32 %v358, %v348
        %v360 = vadd.s32 %v359, %v350
        %v361 = vand.u32 %v338, 65535
        %v362 = vshrl.u32 %v338, 16
        %v363 = vand.u32 %v333, 65535
        %v364 = vshrl.u32 %v333, 16
        %v365 = vmul.u32 %v361, %v363
        %v366 = vmul.u32 %v361, %v364
        %v367 = vmul.u32 %v362, %v363
        %v368 = vmul.u32 %v362, %v364
        %v369 = vshll.u32 %v366, 16
        %v370 = vshrl.u32 %v366, 16
        %v371 = vshll.u32 %v367, 16
        %v372 = vshrl.u32 %v367, 16
        %vm373 = vc.u32 %v365, %v369
        %v374 = vsel %vm373, 1, 0
        %v375 = vadd.s32 %v365, %v369
        %v376 = vadd.s32 %v368, %v374
        %vm377 = vc.u32 %v375, %v371
        %v378 = vsel %vm377, 1, 0
        %v379 = vadd.s32 %v375, %v371
        %v380 = vadd.s32 %v376, %v378
        %v381 = vadd.s32 %v380, %v370
        %v382 = vadd.s32 %v381, %v372
        %v383 = vmul.u32 %v338, %v329
        %v384 = vadd.s32 %v360, %v379
        %vm385 = vc.u32 %v360, %v379
        %v386 = vadd.s32 %v382, 1
        %v387 = vsel %vm385, %v386, %v382
        %v388 = vadd.s32 %v383, %v387
        %v389 = vadd.s32 %v388, 536870912
        %v390 = vshrl.u32 %v389, 30
        %v391 = vshll.u32 %v390, 30
        %v392 = vsub.s32 %v388, %v391
        %vm393 = vcmp.lt.s32.totalorder %v392, 0
        %v394 = vsub.s32 0, %v392
        %v395 = vsel %vm393, %v394, %v392
        %v396 = vclz %v395
        %v397 = vsub.s32 %v396, 2
        %vm398 = vcmp.gt.s32.totalorder 0, %v397
        %v399 = vsel %vm398, 0, %v397
        %v400 = vsub.s32 32, %v399
        %v401 = vshll.u32 %v392, %v399
        %v402 = vshrl.u32 %v384, %v400
        %v403 = vor.u32 %v401, %v402
        %v404 = vsub.s32 4294967266, %v399
        %v405 = vadd.s32 %v404, 127
        %v406 = vshll.u32 %v405, 23
        %v407 = vor.u32 4788187, %v406
        %v408 = vand.u32 2147483647, %v407
        %v410 = vcvt.s32.f32 %v403
        %v411 = vmul.f32 %v410, %v408
        %v412 = vxor.u32 %v411, 2147483648
        %v413 = vsel %vm292, %v412, %v411
        %v414 = vsub.s32 4, %v390
        %v415 = vsel %vm292, %v414, %v390
        %v416 = vsel %vm291, %v289, %v413
        %v417 = vsel %vm291, 0, %v415
        %v418 = vmul.f32 %v416, %v416
        %v419 = vmul.f32 %v418, -0.001358992
        %v420 = vadd.f32 %v419, 0.041655596
        %v421 = vmul.f32 %v418, %v420
        %v422 = vadd.f32 %v421, -0.4999988
        %v423 = vmul.f32 %v418, %v422
        %v424 = vadd.f32 1.0, %v423
        %v425 = vmul.f32 %v416, %v416
        %v426 = vmul.f32 %v425, -0.00019511016
        %v427 = vadd.f32 %v426, 0.008332121
        %v428 = vmul.f32 %v425, %v427
        %v429 = vadd.f32 %v428, -0.16666654
        %v430 = vmul.f32 %v425, %v429
        %v431 = vadd.f32 %v430, 1.0
        %v432 = vmul.f32 %v431, %v416
        %vm433 = vweird.f32 %v289
        %v434 = vand.u32 %v417, 3
        %vm435 = vcmp.lt.s32.totalorder %v434, 2
        %vm436 = vcmp.eq.s32.totalorder %v434, 0
        %v437 = vxor.u32 %v432, 2147483648
        %v438 = vsel %vm436, %v424, %v437
        %vm439 = vcmp.eq.s32.totalorder %v434, 2
        %v440 = vxor.u32 %v424, 2147483648
        %v441 = vsel %vm439, %v440, %v432
        %v442 = vsel %vm435, %v438, %v441
        %v443 = vsel %vm433, nan, %v442
        %v444 = vmul.f32 %v288, %v443
        %v445 = vld [vmem:[%s2] sm:$0xff]
        %v446 = vld [vmem:[%s183] sm:$0xff]
        %448 = vset.pattern.permute.xlu0 0
        %449 = vperm.xlu0 %448, %v445
        %v450 = vpop.permute.xlu0 %449
        %v452 = vmul.f32 %v444, %v450
        %v453 = vadd.f32 %v446, %v452
        %vm454 = vcmp.ge.f32.partialorder %v453, 0.0
        %v455 = vmul.f32 %v453, 0.2
        %v456 = vsel %vm454, %v453, %v455
        %457 = vst [vmem:[%s206] sm:$0xff] %v456
        %s458 = sand.u32 %s113, 1
        %s459 = scalar_lea.sflag [#allocation5], %s458
        %s460 = sand.u32 %s113, 1
        %s461 = smul.addr %s460, 8
        %s462 = scalar_lea.vmem [#allocation6], %s461
        // Predicated region
        $region37: #{tpu_custom_call.1} parent=31 // pred_check
          %p463 = pneg %p123
        $region38: #{tpu_custom_call.1} parent=31 // pred_check_branch
          %465 = sbr.rel (%p463) target = $region40
        $region39: #{tpu_custom_call.1} parent=31 // pred_region
          %467 = vsyncadd %s459, 0
          %s468 = smul.addr %s25, 4
          %s469 = sadd.s32 %s26, %s468
          %s470 = smul.addr %s469, 8
          %s471 = scalar_lea.hbm %s3, %s470
          %s473 = sshll.u32 %s462, 4
          %s474 = int_to_ptr.vmem [resolvable:$true] %s473
          %s475 = sshll.u32 %s471, 4
          %s476 = int_to_ptr.hbm [resolvable:$true] %s475
          %478 = dma.vmem_to_hbm [thread:$0]  %s474, 128, %s476, %s459
        $region40: #{tpu_custom_call.1} parent=31 // pred_fallthru
          _
      $region32: #{tpu_custom_call.1} parent=5 // pred_fallthru
        _
      %p479 = scmp.le.s32.totalorder 2, %s16
      // Predicated region
      $region41: #{tpu_custom_call.1} parent=5 // pred_check
        %p480 = pneg %p479
      $region42: #{tpu_custom_call.1} parent=5 // pred_check_branch
        %482 = sbr.rel (%p480) target = $region44
      $region43: #{tpu_custom_call.1} parent=5 // pred_region
        %s483 = ssub.s32 %s16, 2
        // Predicated region
        $region45: #{tpu_custom_call.1} parent=43 // pred_check
          %p484 = pneg %p129
        $region46: #{tpu_custom_call.1} parent=43 // pred_check_branch
          %486 = sbr.rel (%p484) target = $region48
        $region47: #{tpu_custom_call.1} parent=43 // pred_region
          %s487 = sand.u32 %s114, 1
          %s488 = scalar_lea.sflag [#allocation5], %s487
          %s489 = sand.u32 %s114, 1
          %s490 = smul.addr %s489, 8
          %s491 = scalar_lea.vmem [#allocation6], %s490
          %493 = dma.done %s488, 128
        $region48: #{tpu_custom_call.1} parent=43 // pred_fallthru
          _
      $region44: #{tpu_custom_call.1} parent=5 // pred_fallthru
        _
    $region6: #{tpu_custom_call.1} parent=1 // loop_footer
      %s20 = sadd.s32 1, %s16
    $region7: #{tpu_custom_call.1} parent=1 // loop_footer_branch
      %15 = sbr.rel target = $region3
    $region8: #{tpu_custom_call.1} parent=1 // loop_exit
      _
    %494 = vsyncpa [#allocation4], 1
    %s495 = scalar_lea.sflag [#allocation4], 1
    %496 = vsyncpa %s495, 1
    %497 = vsyncpa [#allocation5], 1
    %s498 = scalar_lea.sflag [#allocation5], 1
    %499 = vsyncpa %s498, 1

</llo_original>
